<compile_context>
chip_gen: v7x
topology: tpu7x:2x2x1
jax: 0.10.0
libtpu: 0.0.40
codegen_flags: <defaults>
</compile_context>

<pallas_src>
import functools

import jax
import jax.numpy as jnp
from jax.experimental import pallas as pl
from jax.experimental.pallas import tpu as pltpu

EPS = 1e-12
MARGIN = 1.0

_LANE = 128
_TILE_BYTES_TARGET = 4 * 1024 * 1024      # ~4 MiB per input tile per buffer


def _round_up(x, m):
    return ((x + m - 1) // m) * m


def _vmem_limit_bytes():
    # Generation-aware: 128 MiB on v5e/v6e, 64 MiB per TensorCore on v7x.
    try:
        cap = int(pltpu.get_tpu_info().vmem_capacity_bytes)
    except Exception:
        cap = 64 * 1024 * 1024            # conservative fallback (v7x per-TC)
    return min(cap * 3 // 4, 96 * 1024 * 1024)


def _pick_chunk(dp):
    # dp is a multiple of 128; pick a 128-multiple chunk width <= 512 that
    # divides dp so the in-kernel loop needs no remainder handling.
    if dp <= 512:
        return dp
    for c in (512, 384, 256, 128):
        if dp % c == 0:
            return c
    return 128  # unreachable (dp % 128 == 0)


def _pick_block_rows(batch, dp, itemsize, chunk, vmem_limit):
    budget = vmem_limit * 4 // 5
    # per-row bytes: 2 inputs x 2 pipeline buffers (native dtype) + ~5 live
    # f32 chunk temporaries + the (tb,128) accumulator / transpose temp / outs.
    per_row = 4 * dp * itemsize + 20 * chunk + 2048
    tb_budget = max(8, budget // per_row)
    tb_target = max(8, _TILE_BYTES_TARGET // max(dp * itemsize, 1))
    tb = min(tb_budget, tb_target)
    # keep >= 2 grid steps when the batch allows (pipelining; megacore on v7x)
    if batch > 8:
        tb = min(tb, _round_up(-(-batch // 2), 8))
    tb = min(tb, _round_up(batch, 8))
    if batch < 8:
        tb = batch                        # full-dim row block (legal) for tiny batches
    elif tb >= _LANE:
        tb = (tb // _LANE) * _LANE        # fully lane-dense output rows when big
    else:
        tb = max(8, (tb // 8) * 8)
    return tb


def _contrastive_kernel(left_ref, right_ref, same_ref, loss_ref, acc_ref, *,
                        margin, eps, chunk, n_chunks):
    """left/right: (TB, Dp) native dtype; same/loss: (1, 1, TB) f32;
    acc: (TB, 128) f32 VMEM scratch of lane-folded partial row sums."""
    f32 = jnp.float32

    def folded_sq(start):
        # One 128-aligned lane chunk: cast -> diff -> square on the VPU, then
        # fold the chunk's 128-lane groups together (VPU adds only, no XLU).
        l = left_ref[:, pl.ds(start, chunk)].astype(f32)
        r = right_ref[:, pl.ds(start, chunk)].astype(f32)
        d = l - r
        d2 = d * d
        part = d2[:, 0:_LANE]
        for k in range(1, chunk // _LANE):
            part = part + d2[:, k * _LANE:(k + 1) * _LANE]
        return part                                        # (TB, 128) f32

    part0 = folded_sq(0)
    if n_chunks > 1:
        acc_ref[...] = part0

        @pl.loop(1, n_chunks)
        def _(c):
            start = pl.multiple_of(c * chunk, chunk)
            acc_ref[...] += folded_sq(start)

        folded = acc_ref[...]
    else:
        folded = part0

    # Tile-aligned XLU transpose + sublane reduce -> lane-major row sums, so
    # is_same and the per-sample losses stay lane-dense (unmasked stores).
    sq_dist = jnp.sum(jnp.transpose(folded, (1, 0)), axis=0, keepdims=True)
    dist = jnp.sqrt(sq_dist + eps)                          # (1, TB), EUP
    is_same = same_ref[0]                                   # (1, TB) f32
    hinge = jnp.maximum(margin - dist, 0.0)
    loss_ref[0] = is_same * (dist * dist) + (1.0 - is_same) * (hinge * hinge)


def contrastive_with_distance_loss(input_left, input_right, is_same,
                                   batch_mean=True, margin=MARGIN, eps=EPS,
                                   block_rows=None):
    """input_left/right: (B, *) f32 or bf16 (kept in native dtype on the wire);
    is_same: (B,) or (B, 1) of {0, 1}.  Returns scalar (batch_mean) or (B,)."""
    batch = input_left.shape[0]
    left2d = input_left.reshape(batch, -1)
    right2d = input_right.reshape(batch, -1)
    d = left2d.shape[1]

    # Pad feature dim to a lane multiple (exact: zero columns add 0 to the
    # squared distance).  No-op for the common 128-multiple embedding sizes.
    dp = _round_up(d, _LANE)
    if dp != d:
        left2d = jnp.pad(left2d, ((0, 0), (0, dp - d)))
        right2d = jnp.pad(right2d, ((0, 0), (0, dp - d)))

    itemsize = jnp.dtype(left2d.dtype).itemsize
    chunk = _pick_chunk(dp)
    n_chunks = dp // chunk
    vmem_limit = _vmem_limit_bytes()

    if block_rows is None:
        tb = _pick_block_rows(batch, dp, itemsize, chunk, vmem_limit)
    else:
        tb = max(8, (int(block_rows) // 8) * 8)
        tb = min(tb, _round_up(batch, 8))
        if batch < 8:
            tb = batch

    grid_rows = -(-batch // tb)                   # cdiv
    padded_batch = grid_rows * tb

    # is_same travels lane-major, padded to the grid; padded/stale rows of the
    # last tile are sliced away before the mean, so they never contribute.
    same = is_same.reshape(batch).astype(jnp.float32)
    if padded_batch != batch:
        same = jnp.pad(same, (0, padded_batch - batch))
    same = same.reshape(grid_rows, 1, tb)

    kernel = functools.partial(_contrastive_kernel, margin=float(margin),
                               eps=float(eps), chunk=chunk, n_chunks=n_chunks)

    out = pl.pallas_call(
        kernel,
        grid=(grid_rows,),
        in_specs=[
            pl.BlockSpec((tb, dp), lambda i: (i, 0)),        # left  (native dtype)
            pl.BlockSpec((tb, dp), lambda i: (i, 0)),        # right (native dtype)
            pl.BlockSpec((1, 1, tb), lambda i: (i, 0, 0)),   # is_same, lane-major
        ],
        out_specs=pl.BlockSpec((1, 1, tb), lambda i: (i, 0, 0)),
        out_shape=jax.ShapeDtypeStruct((grid_rows, 1, tb), jnp.float32),
        scratch_shapes=[pltpu.VMEM((tb, _LANE), jnp.float32)],
        compiler_params=pltpu.CompilerParams(
            dimension_semantics=("parallel",),
            vmem_limit_bytes=vmem_limit,
        ),
    )(left2d, right2d, same)

    per_sample = out.reshape(-1)[:batch]                     # exactly B valid rows
    if batch_mean:
        return jnp.mean(per_sample)                          # denominator = B
    return per_sample


def _reference(input_left, input_right, is_same, batch_mean=True,
               margin=MARGIN, eps=EPS):
    # Pure-JAX reference mirroring the PyTorch forward (Euclidean distance_fn;
    # eps kept inside the sqrt, same convention as the kernel).
    b = input_left.shape[0]
    l = input_left.reshape(b, -1).astype(jnp.float32)
    r = input_right.reshape(b, -1).astype(jnp.float32)
    dist = jnp.sqrt(jnp.sum((l - r) ** 2, axis=-1) + eps)
    s = is_same.reshape(b).astype(jnp.float32)
    loss = s * dist ** 2 + (1.0 - s) * jnp.maximum(margin - dist, 0.0) ** 2
    return loss.mean(axis=0) if batch_mean else loss


if __name__ == "__main__":
    key = jax.random.PRNGKey(0)
    k1, k2, k3 = jax.random.split(key, 3)

    # --- Test 1: f32, batch tiled into 4 blocks, single D chunk --------------
    B, D = 64, 256
    left = jax.random.normal(k1, (B, D), dtype=jnp.float32)
    right = jax.random.normal(k2, (B, D), dtype=jnp.float32)
    is_same = (jax.random.uniform(k3, (B,)) > 0.5).astype(jnp.float32)

    out_mean = contrastive_with_distance_loss(left, right, is_same,
                                              batch_mean=True, block_rows=16)
    out_vec = contrastive_with_distance_loss(left, right, is_same,
                                             batch_mean=False, block_rows=16)
    jax.block_until_ready((out_mean, out_vec))
    ref_mean = _reference(left, right, is_same, batch_mean=True)
    ref_vec = _reference(left, right, is_same, batch_mean=False)
    assert jnp.allclose(out_mean, ref_mean, rtol=1e-5, atol=1e-5)
    assert jnp.allclose(out_vec, ref_vec, rtol=1e-5, atol=1e-5)

    # --- Test 2: bf16 on the wire, D=200 (lane-padded), remainder batch tile -
    B2, D2 = 40, 200
    left16 = jax.random.normal(k1, (B2, D2), dtype=jnp.float32).astype(jnp.bfloat16)
    right16 = jax.random.normal(k2, (B2, D2), dtype=jnp.float32).astype(jnp.bfloat16)
    same2 = (jax.random.uniform(k3, (B2,)) > 0.5).astype(jnp.float32)
    out2 = contrastive_with_distance_loss(left16, right16, same2,
                                          batch_mean=True, block_rows=16)
    jax.block_until_ready(out2)
    ref2 = _reference(left16, right16, same2, batch_mean=True)
    assert jnp.allclose(out2, ref2, rtol=1e-4, atol=1e-4)

    # --- Test 3: multi-chunk feature axis (D=1152 -> chunk=384, 3 chunks) ----
    B3, D3 = 48, 1152
    left3 = jax.random.normal(k1, (B3, D3), dtype=jnp.float32)
    right3 = jax.random.normal(k2, (B3, D3), dtype=jnp.float32)
    same3 = (jax.random.uniform(k3, (B3,)) > 0.5).astype(jnp.float32)
    out3 = contrastive_with_distance_loss(left3, right3, same3,
                                          batch_mean=False, block_rows=16)
    jax.block_until_ready(out3)
    ref3 = _reference(left3, right3, same3, batch_mean=False)
    assert jnp.allclose(out3, ref3, rtol=1e-5, atol=1e-4)

    # --- Test 4: automatic (generation-aware) tile configuration -------------
    out4 = contrastive_with_distance_loss(left, right, is_same, batch_mean=True)
    jax.block_until_ready(out4)
    assert jnp.allclose(out4, ref_mean, rtol=1e-5, atol=1e-5)

    print("KERNEL_OK")
</pallas_src>

<mosaic_0001>
module attributes {stable_mosaic.version = 11 : i64} {
  func.func @_contrastive_kernel(%arg0: i32, %arg1: memref<16x256xf32, #tpu.memory_space<vmem>>, %arg2: memref<16x256xf32, #tpu.memory_space<vmem>>, %arg3: memref<1x1x16xf32, #tpu.memory_space<vmem>>, %arg4: memref<1x1x16xf32, #tpu.memory_space<vmem>>, %arg5: memref<16x128xf32, #tpu.memory_space<vmem>>) attributes {dimension_semantics = [#tpu.dimension_semantics<parallel>], iteration_bounds = array<i64: 4>, scalar_prefetch = 0 : i64, scratch_operands = 1 : i64, tpu.core_type = #tpu.core_type<tc>, window_params = [{transform_indices = @transform_0, window_bounds = array<i64: 16, 256>}, {transform_indices = @transform_1, window_bounds = array<i64: 16, 256>}, {transform_indices = @transform_2, window_bounds = array<i64: 1, 1, 16>}, {transform_indices = @transform_3, window_bounds = array<i64: 1, 1, 16>}]} {
    %c0 = arith.constant 0 : index
    %c0_0 = arith.constant 0 : index
    %0 = vector.load %arg1[%c0, %c0_0] : memref<16x256xf32, #tpu.memory_space<vmem>>, vector<16x256xf32>
    %c0_1 = arith.constant 0 : index
    %c0_2 = arith.constant 0 : index
    %1 = vector.load %arg2[%c0_1, %c0_2] : memref<16x256xf32, #tpu.memory_space<vmem>>, vector<16x256xf32>
    %2 = arith.subf %0, %1 : vector<16x256xf32>
    %3 = arith.mulf %2, %2 : vector<16x256xf32>
    %4 = vector.extract_strided_slice %3 {offsets = [0, 0], sizes = [16, 128], strides = [1, 1]} : vector<16x256xf32> to vector<16x128xf32>
    %5 = vector.extract_strided_slice %3 {offsets = [0, 128], sizes = [16, 128], strides = [1, 1]} : vector<16x256xf32> to vector<16x128xf32>
    %6 = arith.addf %4, %5 : vector<16x128xf32>
    %7 = tpu.transpose %6, [1, 0] : vector<16x128xf32> -> vector<128x16xf32>
    %cst = arith.constant dense<0.000000e+00> : vector<16xf32>
    %8 = vector.multi_reduction <add>, %7, %cst [0] : vector<128x16xf32> to vector<16xf32>
    %9 = vector.shape_cast %8 : vector<16xf32> to vector<1x16xf32>
    %cst_3 = arith.constant 9.99999996E-13 : f32
    %10 = vector.broadcast %cst_3 : f32 to vector<1x16xf32>
    %11 = arith.addf %9, %10 : vector<1x16xf32>
    %12 = math.sqrt %11 : vector<1x16xf32>
    %c0_4 = arith.constant 0 : index
    %c0_5 = arith.constant 0 : index
    %c0_6 = arith.constant 0 : index
    %13 = vector.load %arg3[%c0_4, %c0_5, %c0_6] : memref<1x1x16xf32, #tpu.memory_space<vmem>>, vector<1x1x16xf32>
    %14 = vector.shape_cast %13 : vector<1x1x16xf32> to vector<1x16xf32>
    %cst_7 = arith.constant 1.000000e+00 : f32
    %15 = vector.broadcast %cst_7 : f32 to vector<1x16xf32>
    %16 = arith.subf %15, %12 : vector<1x16xf32>
    %cst_8 = arith.constant 0.000000e+00 : f32
    %17 = vector.broadcast %cst_8 : f32 to vector<1x16xf32>
    %18 = arith.maximumf %16, %17 : vector<1x16xf32>
    %19 = arith.mulf %12, %12 : vector<1x16xf32>
    %20 = arith.mulf %14, %19 : vector<1x16xf32>
    %cst_9 = arith.constant 1.000000e+00 : f32
    %21 = vector.broadcast %cst_9 : f32 to vector<1x16xf32>
    %22 = arith.subf %21, %14 : vector<1x16xf32>
    %23 = arith.mulf %18, %18 : vector<1x16xf32>
    %24 = arith.mulf %22, %23 : vector<1x16xf32>
    %25 = arith.addf %20, %24 : vector<1x16xf32>
    %c0_10 = arith.constant 0 : index
    %c0_11 = arith.constant 0 : index
    %c0_12 = arith.constant 0 : index
    %26 = vector.load %arg4[%c0_10, %c0_11, %c0_12] : memref<1x1x16xf32, #tpu.memory_space<vmem>>, vector<1x1x16xf32>
    %27 = vector.shape_cast %26 : vector<1x1x16xf32> to vector<1x16xf32>
    %28 = vector.shape_cast %25 : vector<1x16xf32> to vector<1x1x16xf32>
    tpu.vector_store %arg4[%c0_10, %c0_11, %c0_12], %28 {strides = array<i32>} : memref<1x1x16xf32, #tpu.memory_space<vmem>>, vector<1x1x16xf32>,
    return
  }
  func.func @transform_0(%arg0: i32) -> (i32, i32) {
    %c0_i32 = arith.constant 0 : i32
    %c0_i32_0 = arith.constant 0 : i32
    return %arg0, %c0_i32 : i32, i32
  }
  func.func @transform_1(%arg0: i32) -> (i32, i32) {
    %c0_i32 = arith.constant 0 : i32
    %c0_i32_0 = arith.constant 0 : i32
    return %arg0, %c0_i32 : i32, i32
  }
  func.func @transform_2(%arg0: i32) -> (i32, i32, i32) {
    %c0_i32 = arith.constant 0 : i32
    %c0_i32_0 = arith.constant 0 : i32
    %c0_i32_1 = arith.constant 0 : i32
    return %arg0, %c0_i32, %c0_i32_0 : i32, i32, i32
  }
  func.func @transform_3(%arg0: i32) -> (i32, i32, i32) {
    %c0_i32 = arith.constant 0 : i32
    %c0_i32_0 = arith.constant 0 : i32
    %c0_i32_1 = arith.constant 0 : i32
    return %arg0, %c0_i32, %c0_i32_0 : i32, i32, i32
  }
}

</mosaic_0001>

<llo_original>
// kernel: tpu_custom_call.1
$region0: #{tpu_custom_call.1}
  #allocation0 [shape = 'u32[]', space=smem, size = 0x4, offset = 0x4, fixed_abs, tag = 'smem constant byte address 0x4 - core index']
  #allocation1 [shape = 'u32[144,128]{1,0:T(1,128)}', space=vmem, size = 0x12000, scoped, tag = 'internal scratch']
  #allocation2 [shape = 'f32[16,128]{1,0:T(8,128)}', space=vmem, size = 0x2000, scoped, tag = 'scratch operand']
  %s0 = inlined_call_operand.hbm [shape: f32[64,256], index: 0, kind: input, shape index: {}]
  %s1 = inlined_call_operand.hbm [shape: f32[64,256], index: 1, kind: input, shape index: {}]
  %s2 = inlined_call_operand.vmem [shape: f32[4,1,16], index: 2, kind: input, shape index: {}]
  %s3 = inlined_call_operand.hbm [shape: f32[4,1,16], index: 3, kind: output, shape index: {}]
  %s4 = sld [smem:[#allocation0]]
  $region53: #{tpu_custom_call.1} parent=0
    _
  %s6 = ssub.s32 1, %s4
  %s7 = scalar_select 0, %s6, %s4
  $region1: #{tpu_custom_call.1} parent=0
    #allocation3 [shape = 'u8[32768]{0}', space=vmem, size = 0x8000, scoped, tag = 'input window, operand 0']
    #allocation4 [shape = 's32[2]{0}', space=sflag, size = 0x8, scoped, tag = 'scoped memory for tpu_custom_call.1']
    #allocation5 [shape = 's32[2]{0}', space=sflag, size = 0x8, scoped, tag = 'scoped memory for tpu_custom_call.1']
    #allocation6 [shape = 'u8[32768]{0}', space=vmem, size = 0x8000, scoped, tag = 'input window, operand 1']
    #allocation7 [shape = 's32[2]{0}', space=sflag, size = 0x8, scoped, tag = 'scoped memory for tpu_custom_call.1']
    #allocation8 [shape = 'u8[1024]{0}', space=vmem, size = 0x400, scoped, tag = 'output window, operand 0']
    %8 = vsyncpa [#allocation4], 0
    %s9 = scalar_lea.sflag [#allocation4], 1
    %10 = vsyncpa %s9, 0
    %11 = vsyncpa [#allocation7], 0
    %s12 = scalar_lea.sflag [#allocation7], 1
    %13 = vsyncpa %s12, 0
    %14 = vsyncpa [#allocation5], 0
    %s15 = scalar_lea.sflag [#allocation5], 1
    %16 = vsyncpa %s15, 0
    loop: start=0, step=1, limit=6
    $region2: #{tpu_custom_call.1} parent=1 // loop_pre_header
      _
    $region3: #{tpu_custom_call.1} parent=1 // loop_header
      %s18 = sphi 0, %s22
      %p19 = scmp.ge.s32.totalorder %s18, 6
      %s28 = sphi 0, %s30
      %s31 = sphi 0, %s28
      %s32 = sphi 0, %s31
      %s48 = sphi 0, %s32
      %s54 = sphi 0, %s56
      %s57 = sphi 0, %s54
      %s58 = sphi 0, %s57
      %s74 = sphi 0, %s58
      %s80 = sphi 0, %s82
      %s83 = sphi 0, %s80
      %s84 = sphi 0, %s83
      %s100 = sphi 0, %s84
      %s106 = sphi 0, %s108
      %s109 = sphi 0, %s106
      %s110 = sphi 0, %s109
      %s126 = sphi 0, %s110
    $region4: #{tpu_custom_call.1} parent=1 // loop_header_branch
      %21 = sbr.rel (%p19) target = $region8
    $region5: #{tpu_custom_call.1} parent=1 // loop_body
      %s23 = ssub.s32 %s18, 1
      %s24 = ssub.s32 %s18, 2
      %s25 = sadd.s32 %s18, 1
      %s26 = ssub.s32 %s18, %s25
      %p27 = scmp.eq.s32.totalorder %s26, 0
      %s29 = sadd.s32 %s28, 1
      %s30 = scalar_select %p27, %s28, %s29
      %p33 = pneg %p27
      %p34 = scmp.eq.s32.totalorder %s18, 3
      %p35 = por %p33, %p34
      %p36 = scmp.ne.s32.totalorder %s28, %s31
      %p37 = scmp.eq.s32.totalorder %s18, 0
      %p38 = por %p36, %p37
      %p39 = scmp.ne.s32.totalorder %s28, %s31
      %p40 = scmp.eq.s32.totalorder %s23, 3
      %p41 = por %p39, %p40
      %p42 = scmp.ne.s32.totalorder %s31, %s32
      %p43 = scmp.eq.s32.totalorder %s23, 0
      %p44 = por %p42, %p43
      %p45 = scmp.ne.s32.totalorder %s31, %s32
      %p46 = scmp.eq.s32.totalorder %s24, 3
      %p47 = por %p45, %p46
      %p49 = scmp.ne.s32.totalorder %s32, %s48
      %p50 = scmp.eq.s32.totalorder %s24, 0
      %p51 = por %p49, %p50
      %s52 = ssub.s32 %s18, %s25
      %p53 = scmp.eq.s32.totalorder %s52, 0
      %s55 = sadd.s32 %s54, 1
      %s56 = scalar_select %p53, %s54, %s55
      %p59 = pneg %p53
      %p60 = scmp.eq.s32.totalorder %s18, 3
      %p61 = por %p59, %p60
      %p62 = scmp.ne.s32.totalorder %s54, %s57
      %p63 = scmp.eq.s32.totalorder %s18, 0
      %p64 = por %p62, %p63
      %p65 = scmp.ne.s32.totalorder %s54, %s57
      %p66 = scmp.eq.s32.totalorder %s23, 3
      %p67 = por %p65, %p66
      %p68 = scmp.ne.s32.totalorder %s57, %s58
      %p69 = scmp.eq.s32.totalorder %s23, 0
      %p70 = por %p68, %p69
      %p71 = scmp.ne.s32.totalorder %s57, %s58
      %p72 = scmp.eq.s32.totalorder %s24, 3
      %p73 = por %p71, %p72
      %p75 = scmp.ne.s32.totalorder %s58, %s74
      %p76 = scmp.eq.s32.totalorder %s24, 0
      %p77 = por %p75, %p76
      %s78 = ssub.s32 %s18, %s25
      %p79 = scmp.eq.s32.totalorder %s78, 0
      %s81 = sadd.s32 %s80, 1
      %s82 = scalar_select %p79, %s80, %s81
      %p85 = pneg %p79
      %p86 = scmp.eq.s32.totalorder %s18, 3
      %p87 = por %p85, %p86
      %p88 = scmp.ne.s32.totalorder %s80, %s83
      %p89 = scmp.eq.s32.totalorder %s18, 0
      %p90 = por %p88, %p89
      %p91 = scmp.ne.s32.totalorder %s80, %s83
      %p92 = scmp.eq.s32.totalorder %s23, 3
      %p93 = por %p91, %p92
      %p94 = scmp.ne.s32.totalorder %s83, %s84
      %p95 = scmp.eq.s32.totalorder %s23, 0
      %p96 = por %p94, %p95
      %p97 = scmp.ne.s32.totalorder %s83, %s84
      %p98 = scmp.eq.s32.totalorder %s24, 3
      %p99 = por %p97, %p98
      %p101 = scmp.ne.s32.totalorder %s84, %s100
      %p102 = scmp.eq.s32.totalorder %s24, 0
      %p103 = por %p101, %p102
      %s104 = ssub.s32 %s18, %s25
      %p105 = scmp.eq.s32.totalorder %s104, 0
      %s107 = sadd.s32 %s106, 1
      %s108 = scalar_select %p105, %s106, %s107
      %p111 = pneg %p105
      %p112 = scmp.eq.s32.totalorder %s18, 3
      %p113 = por %p111, %p112
      %p114 = scmp.ne.s32.totalorder %s106, %s109
      %p115 = scmp.eq.s32.totalorder %s18, 0
      %p116 = por %p114, %p115
      %p117 = scmp.ne.s32.totalorder %s106, %s109
      %p118 = scmp.eq.s32.totalorder %s23, 3
      %p119 = por %p117, %p118
      %p120 = scmp.ne.s32.totalorder %s109, %s110
      %p121 = scmp.eq.s32.totalorder %s23, 0
      %p122 = por %p120, %p121
      %p123 = scmp.ne.s32.totalorder %s109, %s110
      %p124 = scmp.eq.s32.totalorder %s24, 3
      %p125 = por %p123, %p124
      %p127 = scmp.ne.s32.totalorder %s110, %s126
      %p128 = scmp.eq.s32.totalorder %s24, 0
      %p129 = por %p127, %p128
      %p130 = scmp.le.s32.totalorder 1, %s18
      %p131 = scmp.lt.s32.totalorder %s18, 5
      %p132 = pnand %p130, %p131
      %p133 = pneg %p132
      // Predicated region
      $region9: #{tpu_custom_call.1} parent=5 // pred_check
        _
      $region10: #{tpu_custom_call.1} parent=5 // pred_check_branch
        %135 = sbr.rel (%p132) target = $region12
      $region11: #{tpu_custom_call.1} parent=5 // pred_region
        %s136 = ssub.s32 %s18, 1
      $region12: #{tpu_custom_call.1} parent=5 // pred_fallthru
        _
      %p137 = scmp.lt.s32.totalorder %s18, 4
      // Predicated region
      $region13: #{tpu_custom_call.1} parent=5 // pred_check
        %p138 = pneg %p137
      $region14: #{tpu_custom_call.1} parent=5 // pred_check_branch
        %140 = sbr.rel (%p138) target = $region16
      $region15: #{tpu_custom_call.1} parent=5 // pred_region
        // Predicated region
        $region17: #{tpu_custom_call.1} parent=15 // pred_check
          %p141 = pneg %p38
        $region18: #{tpu_custom_call.1} parent=15 // pred_check_branch
          %143 = sbr.rel (%p141) target = $region20
        $region19: #{tpu_custom_call.1} parent=15 // pred_region
          %s144 = sand.u32 %s28, 1
          %s145 = scalar_lea.sflag [#allocation4], %s144
          %s146 = sand.u32 %s28, 1
          %s147 = smul.addr %s146, 32
          %s148 = scalar_lea.vmem [#allocation3], %s147
          %s149 = smul.u32 2, %s18
          %s151 = ssub.s32 512, 512
          %152 = vsyncadd %s145, %s151
          %s153 = smul.addr %s149, 2
          %s154 = smul.addr %s153, 128
          %s155 = scalar_lea.hbm %s0, %s154
          %s156 = sshll.u32 %s148, 4
          %s157 = int_to_ptr.vmem [resolvable:$true] %s156
          %162 = dma.hbm_to_vmem [thread:$0]  %s155, 512, %s157, %s145, 256, 256, 16
        $region20: #{tpu_custom_call.1} parent=15 // pred_fallthru
          _
        // Predicated region
        $region21: #{tpu_custom_call.1} parent=15 // pred_check
          %p163 = pneg %p64
        $region22: #{tpu_custom_call.1} parent=15 // pred_check_branch
          %165 = sbr.rel (%p163) target = $region24
        $region23: #{tpu_custom_call.1} parent=15 // pred_region
          %s166 = sand.u32 %s54, 1
          %s167 = scalar_lea.sflag [#allocation7], %s166
          %s168 = sand.u32 %s54, 1
          %s169 = smul.addr %s168, 32
          %s170 = scalar_lea.vmem [#allocation6], %s169
          %s171 = smul.u32 2, %s18
          %s173 = ssub.s32 512, 512
          %174 = vsyncadd %s167, %s173
          %s175 = smul.addr %s171, 2
          %s176 = smul.addr %s175, 128
          %s177 = scalar_lea.hbm %s1, %s176
          %s178 = sshll.u32 %s170, 4
          %s179 = int_to_ptr.vmem [resolvable:$true] %s178
          %184 = dma.hbm_to_vmem [thread:$0]  %s177, 512, %s179, %s167, 256, 256, 16
        $region24: #{tpu_custom_call.1} parent=15 // pred_fallthru
          _
        // Predicated region
        $region25: #{tpu_custom_call.1} parent=15 // pred_check
          %p185 = pneg %p90
        $region26: #{tpu_custom_call.1} parent=15 // pred_check_branch
          %187 = sbr.rel (%p185) target = $region28
        $region27: #{tpu_custom_call.1} parent=15 // pred_region
          %p188 = scmp.lt.s32.totalorder %s18, 3
          %s189 = scalar_select %p188, %s18, 3
          %s190 = scalar_lea.vmem %s2, %s189
        $region28: #{tpu_custom_call.1} parent=15 // pred_fallthru
          _
      $region16: #{tpu_custom_call.1} parent=5 // pred_fallthru
        _
      %p191 = scmp.le.s32.totalorder 1, %s18
      %p192 = scmp.lt.s32.totalorder %s18, 5
      %p193 = pnand %p191, %p192
      %p194 = pneg %p193
      // Predicated region
      $region29: #{tpu_custom_call.1} parent=5 // pred_check
        _
      $region30: #{tpu_custom_call.1} parent=5 // pred_check_branch
        %196 = sbr.rel (%p193) target = $region32
      $region31: #{tpu_custom_call.1} parent=5 // pred_region
        %s197 = ssub.s32 %s18, 1
        %s198 = sand.u32 %s31, 1
        %s199 = scalar_lea.sflag [#allocation4], %s198
        %s200 = sand.u32 %s31, 1
        %s201 = smul.addr %s200, 32
        %s202 = scalar_lea.vmem [#allocation3], %s201
        // Predicated region
        $region33: #{tpu_custom_call.1} parent=31 // pred_check
          %p203 = pneg %p44
        $region34: #{tpu_custom_call.1} parent=31 // pred_check_branch
          %205 = sbr.rel (%p203) target = $region36
        $region35: #{tpu_custom_call.1} parent=31 // pred_region
          %206 = dma.done %s199, 512
        $region36: #{tpu_custom_call.1} parent=31 // pred_fallthru
          _
        %s207 = sand.u32 %s57, 1
        %s208 = scalar_lea.sflag [#allocation7], %s207
        %s209 = sand.u32 %s57, 1
        %s210 = smul.addr %s209, 32
        %s211 = scalar_lea.vmem [#allocation6], %s210
        // Predicated region
        $region37: #{tpu_custom_call.1} parent=31 // pred_check
          %p212 = pneg %p70
        $region38: #{tpu_custom_call.1} parent=31 // pred_check_branch
          %214 = sbr.rel (%p212) target = $region40
        $region39: #{tpu_custom_call.1} parent=31 // pred_region
          %215 = dma.done %s208, 512
        $region40: #{tpu_custom_call.1} parent=31 // pred_fallthru
          _
        %s216 = sand.u32 %s31, 1
        %s217 = scalar_lea.sflag [#allocation4], %s216
        %s218 = sand.u32 %s31, 1
        %s219 = smul.addr %s218, 32
        %s220 = scalar_lea.vmem [#allocation3], %s219
        %p221 = pneg %p44
        %p222 = pneg %p41
        %s223 = sand.u32 %s57, 1
        %s224 = scalar_lea.sflag [#allocation7], %s223
        %s225 = sand.u32 %s57, 1
        %s226 = smul.addr %s225, 32
        %s227 = scalar_lea.vmem [#allocation6], %s226
        %p228 = pneg %p70
        %p229 = pneg %p67
        %p230 = scmp.lt.s32.totalorder %s23, 3
        %s231 = scalar_select %p230, %s23, 3
        %s232 = scalar_lea.vmem %s2, %s231
        %p233 = pneg %p96
        %p234 = pneg %p93
        %p235 = pneg %p122
        %p236 = pneg %p119
        %s237 = sand.u32 %s109, 1
        %s238 = scalar_lea.sflag [#allocation5], %s237
        %s239 = sand.u32 %s109, 1
        %s240 = scalar_lea.vmem [#allocation8], %s239
        %s241 = smul.u32 2, %s23
        %s242 = smul.u32 2, %s23
        %p243 = scmp.lt.s32.totalorder %s23, 3
        %s244 = scalar_select %p243, %s23, 3
        %s245 = scalar_lea.vmem %s2, %s244
        %v246 = vld [vmem:[%s202] sm:$0xff]
        %v247 = vld [vmem:[%s202 + $0x8] sm:$0xff]
        %v248 = vld [vmem:[%s202 + $0x10] sm:$0xff]
        %v249 = vld [vmem:[%s202 + $0x18] sm:$0xff]
        %v250 = vld [vmem:[%s211] sm:$0xff]
        %v251 = vld [vmem:[%s211 + $0x8] sm:$0xff]
        %v252 = vld [vmem:[%s211 + $0x10] sm:$0xff]
        %v253 = vld [vmem:[%s211 + $0x18] sm:$0xff]
        %v254 = vsub.f32 %v246, %v250
        %v255 = vsub.f32 %v247, %v251
        %v256 = vsub.f32 %v248, %v252
        %v257 = vsub.f32 %v249, %v253
        %v258 = vmul.f32 %v254, %v254
        %v259 = vmul.f32 %v255, %v255
        %v260 = vmul.f32 %v256, %v256
        %v261 = vmul.f32 %v257, %v257
        %v262 = vadd.f32 %v258, %v259
        %v263 = vadd.f32 %v260, %v261
        %264 = vxpose.xlu0.b32.start [1/16] %v262, 128
        %265 = vxpose.xlu0.b32.cont [2/16] %v263, 128
        %266 = vxpose.xlu0.b32.cont [3/16] 0.0, 128
        %267 = vxpose.xlu0.b32.cont [4/16] 0.0, 128
        %268 = vxpose.xlu0.b32.cont [5/16] 0.0, 128
        %269 = vxpose.xlu0.b32.cont [6/16] 0.0, 128
        %270 = vxpose.xlu0.b32.cont [7/16] 0.0, 128
        %271 = vxpose.xlu0.b32.cont [8/16] 0.0, 128
        %272 = vxpose.xlu0.b32.cont [9/16] 0.0, 128
        %273 = vxpose.xlu0.b32.cont [10/16] 0.0, 128
        %274 = vxpose.xlu0.b32.cont [11/16] 0.0, 128
        %275 = vxpose.xlu0.b32.cont [12/16] 0.0, 128
        %276 = vxpose.xlu0.b32.cont [13/16] 0.0, 128
        %277 = vxpose.xlu0.b32.cont [14/16] 0.0, 128
        %278 = vxpose.xlu0.b32.cont [15/16] 0.0, 128
        %279 = vxpose.xlu0.b32.end [16/16] 0.0, 128
        %v280 = vpop.trf.xlu0
        %v281 = vpop.trf.xlu0
        %v282 = vpop.trf.xlu0
        %v283 = vpop.trf.xlu0
        %v284 = vpop.trf.xlu0
        %v285 = vpop.trf.xlu0
        %v286 = vpop.trf.xlu0
        %v287 = vpop.trf.xlu0
        %v288 = vpop.trf.xlu0
        %v289 = vpop.trf.xlu0
        %v290 = vpop.trf.xlu0
        %v291 = vpop.trf.xlu0
        %v292 = vpop.trf.xlu0
        %v293 = vpop.trf.xlu0
        %v294 = vpop.trf.xlu0
        %v295 = vpop.trf.xlu0
        %vm296 = vcmask 130048
        %v297 = vsel %vm296, %v280, 0.0
        %v298 = vsel %vm296, %v281, 0.0
        %v299 = vadd.f32 %v297, %v298
        %v300 = vsel %vm296, %v282, 0.0
        %v301 = vadd.f32 %v299, %v300
        %v302 = vsel %vm296, %v283, 0.0
        %v303 = vadd.f32 %v301, %v302
        %v304 = vsel %vm296, %v284, 0.0
        %v305 = vadd.f32 %v303, %v304
        %v306 = vsel %vm296, %v285, 0.0
        %v307 = vadd.f32 %v305, %v306
        %v308 = vsel %vm296, %v286, 0.0
        %v309 = vadd.f32 %v307, %v308
        %v310 = vsel %vm296, %v287, 0.0
        %v311 = vadd.f32 %v309, %v310
        %v312 = vsel %vm296, %v288, 0.0
        %v313 = vadd.f32 %v311, %v312
        %v314 = vsel %vm296, %v289, 0.0
        %v315 = vadd.f32 %v313, %v314
        %v316 = vsel %vm296, %v290, 0.0
        %v317 = vadd.f32 %v315, %v316
        %v318 = vsel %vm296, %v291, 0.0
        %v319 = vadd.f32 %v317, %v318
        %v320 = vsel %vm296, %v292, 0.0
        %v321 = vadd.f32 %v319, %v320
        %v322 = vsel %vm296, %v293, 0.0
        %v323 = vadd.f32 %v321, %v322
        %v324 = vsel %vm296, %v294, 0.0
        %v325 = vadd.f32 %v323, %v324
        %v326 = vsel %vm296, %v295, 0.0
        %v327 = vadd.f32 %v325, %v326
        %v328 = vrot.slane %v327, 4
        %v329 = vadd.f32 %v327, %v328
        %v330 = vrot.slane %v329, 2
        %v331 = vadd.f32 %v329, %v330
        %v332 = vrot.slane %v331, 1
        %v333 = vadd.f32 %v331, %v332
        %v334 = vadd.f32 %v333, 1e-12
        %v335 = vrsqrt.pop %v334
        %v336 = vmul.f32 %v334, %v335
        %vm337 = vcmp.eq.f32.partialorder %v334, inf
        %v338 = vsel %vm337, %v334, %v336
        %vm339 = vcmp.eq.f32.partialorder %v334, 0.0
        %v340 = vand.u32 %v334, 2147483648
        %v341 = vsel %vm339, %v340, %v338
        %v342 = vld [vmem:[%s245] sm:$0x1]
        %v343 = vsub.f32 1.0, %v341
        %v344 = vmax.f32 %v343, 0.0
        %v345 = vmul.f32 %v341, %v341
        %v346 = vmul.f32 %v342, %v345
        %v347 = vsub.f32 1.0, %v342
        %v348 = vmul.f32 %v344, %v344
        %v349 = vmul.f32 %v347, %v348
        %v350 = vadd.f32 %v346, %v349
        %vm351 = vcmask 122880
        %352 = vst.msk [vmem:[%s240] sm:$0x1] %vm351, %v350
        %s353 = sand.u32 %s109, 1
        %s354 = scalar_lea.sflag [#allocation5], %s353
        %s355 = sand.u32 %s109, 1
        %s356 = scalar_lea.vmem [#allocation8], %s355
        // Predicated region
        $region41: #{tpu_custom_call.1} parent=31 // pred_check
          %p357 = pneg %p119
        $region42: #{tpu_custom_call.1} parent=31 // pred_check_branch
          %359 = sbr.rel (%p357) target = $region44
        $region43: #{tpu_custom_call.1} parent=31 // pred_region
          %s361 = ssub.s32 16, 16
          %362 = vsyncadd %s354, %s361
          %s363 = smul.addr %s23, 16
          %s364 = scalar_lea.hbm %s3, %s363
          %s366 = sshll.u32 %s356, 4
          %s367 = int_to_ptr.vmem [resolvable:$true] %s366
          %369 = dma.vmem_to_hbm [thread:$0]  %s367, 16, %s364, %s354
        $region44: #{tpu_custom_call.1} parent=31 // pred_fallthru
          _
      $region32: #{tpu_custom_call.1} parent=5 // pred_fallthru
        _
      %p370 = scmp.le.s32.totalorder 2, %s18
      // Predicated region
      $region45: #{tpu_custom_call.1} parent=5 // pred_check
        %p371 = pneg %p370
      $region46: #{tpu_custom_call.1} parent=5 // pred_check_branch
        %373 = sbr.rel (%p371) target = $region48
      $region47: #{tpu_custom_call.1} parent=5 // pred_region
        %s374 = ssub.s32 %s18, 2
        // Predicated region
        $region49: #{tpu_custom_call.1} parent=47 // pred_check
          %p375 = pneg %p125
        $region50: #{tpu_custom_call.1} parent=47 // pred_check_branch
          %377 = sbr.rel (%p375) target = $region52
        $region51: #{tpu_custom_call.1} parent=47 // pred_region
          %s378 = sand.u32 %s110, 1
          %s379 = scalar_lea.sflag [#allocation5], %s378
          %s380 = sand.u32 %s110, 1
          %s381 = scalar_lea.vmem [#allocation8], %s380
          %382 = dma.done %s379, 16
        $region52: #{tpu_custom_call.1} parent=47 // pred_fallthru
          _
      $region48: #{tpu_custom_call.1} parent=5 // pred_fallthru
        _
    $region6: #{tpu_custom_call.1} parent=1 // loop_footer
      %s22 = sadd.s32 1, %s18
    $region7: #{tpu_custom_call.1} parent=1 // loop_footer_branch
      %17 = sbr.rel target = $region3
    $region8: #{tpu_custom_call.1} parent=1 // loop_exit
      _
    %383 = vsyncpa [#allocation4], 1
    %s384 = scalar_lea.sflag [#allocation4], 1
    %385 = vsyncpa %s384, 1
    %386 = vsyncpa [#allocation7], 1
    %s387 = scalar_lea.sflag [#allocation7], 1
    %388 = vsyncpa %s387, 1
    %389 = vsyncpa [#allocation5], 1
    %s390 = scalar_lea.sflag [#allocation5], 1
    %391 = vsyncpa %s390, 1

</llo_original>
